<compile_context>
chip_gen: v6e
topology: v6e:2x2x1
jax: 0.10.0
libtpu: 0.0.40
codegen_flags: <defaults>
</compile_context>

<pallas_src>
import numpy as np
import jax
import jax.numpy as jnp
from jax.experimental import pallas as pl
from jax.experimental.pallas import tpu as pltpu


def _copy_kernel(perm_ref, x_ref, o_ref):
    # The channel gather happens in the index_map (driven by the prefetched
    # permutation table); the body just moves the selected lane-dense slab.
    o_ref[...] = x_ref[...]


def _pick_lane_tile(hw, b, itemsize, budget_bytes=24 * 1024 * 1024):
    """Largest lane tile (multiple of 128, or hw itself) whose double-buffered
    in+out footprint (4x block bytes) fits the VMEM budget."""
    if 4 * b * hw * itemsize <= budget_bytes:
        return hw  # whole per-channel slab fits comfortably
    max_t = (budget_bytes // (4 * b * itemsize)) // 128 * 128
    max_t = max(128, max_t)
    # Prefer a tile that divides hw exactly -> every store is unmasked.
    t = min(max_t, (hw // 128) * 128)
    while t >= 128:
        if hw % t == 0:
            return t
        t -= 128
    return max_t  # fallback: last block is a masked edge store


def permute_channels(x, perm):
    """y[b, c, h, w] = x[b, perm[c], h, w]   (i.e. y = x[:, perm])."""
    B, C, H, W = x.shape
    perm = jnp.asarray(perm, dtype=jnp.int32)

    HW = H * W
    itemsize = jnp.dtype(x.dtype).itemsize
    # Flatten spatial dims -> lane-dense last axis (free reshape for NCHW).
    x2 = x.reshape(B, C, 1, HW)

    t = _pick_lane_tile(HW, B, itemsize)
    n_s = pl.cdiv(HW, t)
    tile_bytes = B * t * itemsize
    vmem_limit = int(min(64 * 1024 * 1024, max(32 * 1024 * 1024, 8 * tile_bytes)))

    grid_spec = pltpu.PrefetchScalarGridSpec(
        num_scalar_prefetch=1,
        grid=(C, n_s),
        in_specs=[
            # Block index along C comes straight from the prefetched table.
            pl.BlockSpec((B, 1, 1, t), lambda c, s, perm_ref: (0, perm_ref[c], 0, s)),
        ],
        out_specs=pl.BlockSpec((B, 1, 1, t), lambda c, s, perm_ref: (0, c, 0, s)),
    )

    y2 = pl.pallas_call(
        _copy_kernel,
        out_shape=jax.ShapeDtypeStruct((B, C, 1, HW), x.dtype),
        grid_spec=grid_spec,
        compiler_params=pltpu.CompilerParams(
            dimension_semantics=("parallel", "arbitrary"),
            vmem_limit_bytes=vmem_limit,
        ),
    )(perm, x2)

    return y2.reshape(B, C, H, W)


class PermuteData:
    """JAX/Pallas port of Permute_data: channel-wise permutation of an NCHW tensor."""

    def __init__(self, input_data, seed):
        # Deterministic permutation, exactly as the PyTorch module builds it.
        np.random.seed(seed)
        self.permute_data = np.random.permutation(input_data).astype(np.int32)
        # Inverse permutation (used when sample_the_data=True).
        inv = np.zeros_like(self.permute_data)
        for i, j in enumerate(self.permute_data):
            inv[j] = i
        self.permute_sample = inv

    def __call__(self, x, sample_the_data=False):
        perm = self.permute_sample if sample_the_data else self.permute_data
        return permute_channels(x, perm)


if __name__ == "__main__":
    B, C, H, W = 2, 4, 16, 16
    key = jax.random.PRNGKey(0)
    x = jax.random.normal(key, (B, C, H, W), dtype=jnp.float32)

    mod = PermuteData(input_data=C, seed=0)

    # forward (permute)
    y = mod(x, sample_the_data=False)
    y = jax.block_until_ready(y)
    y_ref = x[:, jnp.asarray(mod.permute_data)]
    assert jnp.allclose(y, y_ref), "forward permutation mismatch"

    # inverse (sample_the_data=True) — should undo the permutation
    y_inv = mod(y, sample_the_data=True)
    y_inv = jax.block_until_ready(y_inv)
    assert jnp.allclose(y_inv, x), "inverse permutation mismatch"

    print("KERNEL_OK")
</pallas_src>

<mosaic_0001>
module attributes {stable_mosaic.version = 11 : i64} {
  func.func @_copy_kernel(%arg0: i32, %arg1: i32, %arg2: memref<4xi32, #tpu.memory_space<smem>>, %arg3: memref<2x1x1x256xf32, #tpu.memory_space<vmem>>, %arg4: memref<2x1x1x256xf32, #tpu.memory_space<vmem>>) attributes {dimension_semantics = [#tpu.dimension_semantics<parallel>, #tpu.dimension_semantics<arbitrary>], iteration_bounds = array<i64: 4, 1>, scalar_prefetch = 1 : i64, scratch_operands = 0 : i64, tpu.core_type = #tpu.core_type<tc>, window_params = [{transform_indices = @transform_0, window_bounds = array<i64: 2, 1, 1, 256>}, {transform_indices = @transform_1, window_bounds = array<i64: 2, 1, 1, 256>}]} {
    %c0 = arith.constant 0 : index
    %c0_0 = arith.constant 0 : index
    %c0_1 = arith.constant 0 : index
    %c0_2 = arith.constant 0 : index
    %0 = vector.load %arg3[%c0, %c0_0, %c0_1, %c0_2] : memref<2x1x1x256xf32, #tpu.memory_space<vmem>>, vector<2x1x1x256xf32>
    %c0_3 = arith.constant 0 : index
    %c0_4 = arith.constant 0 : index
    %c0_5 = arith.constant 0 : index
    %c0_6 = arith.constant 0 : index
    %1 = vector.load %arg4[%c0_3, %c0_4, %c0_5, %c0_6] : memref<2x1x1x256xf32, #tpu.memory_space<vmem>>, vector<2x1x1x256xf32>
    tpu.vector_store %arg4[%c0_3, %c0_4, %c0_5, %c0_6], %0 {strides = array<i32>} : memref<2x1x1x256xf32, #tpu.memory_space<vmem>>, vector<2x1x1x256xf32>,
    return
  }
  func.func @transform_0(%arg0: i32, %arg1: i32, %arg2: memref<4xi32, #tpu.memory_space<smem>>) -> (i32, i32, i32, i32) {
    %0 = arith.index_cast %arg0 : i32 to index
    %1 = memref.load %arg2[%0] : memref<4xi32, #tpu.memory_space<smem>>
    %c0_i32 = arith.constant 0 : i32
    %c0_i32_0 = arith.constant 0 : i32
    %c0_i32_1 = arith.constant 0 : i32
    return %c0_i32, %1, %c0_i32_0, %arg1 : i32, i32, i32, i32
  }
  func.func @transform_1(%arg0: i32, %arg1: i32, %arg2: memref<4xi32, #tpu.memory_space<smem>>) -> (i32, i32, i32, i32) {
    %c0_i32 = arith.constant 0 : i32
    %c0_i32_0 = arith.constant 0 : i32
    %c0_i32_1 = arith.constant 0 : i32
    return %c0_i32, %arg0, %c0_i32_0, %arg1 : i32, i32, i32, i32
  }
}

</mosaic_0001>

<llo_original>
// kernel: tpu_custom_call.1
$region0: #{tpu_custom_call.1}
  #allocation0 [shape = 'u32[]', space=smem, size = 0x4, offset = 0x4, fixed_abs, tag = 'smem constant byte address 0x4 - core index']
  #allocation1 [shape = 'u32[144,128]{1,0:T(1,128)}', space=vmem, size = 0x12000, scoped, tag = 'internal scratch']
  #allocation2 [shape = 's32[1]{0}', space=sflag, size = 0x4, scoped, tag = 'scoped memory for tpu_custom_call.1']
  #allocation3 [shape = 'u8[512]{0}', space=smem, size = 0x200, scoped, tag = 'prefetched SMEM operand 0']
  %s0 = inlined_call_operand.hbm [shape: s32[4], index: 0, kind: input, shape index: {}]
  %s1 = inlined_call_operand.hbm [shape: f32[2,4,1,256], index: 1, kind: input, shape index: {}]
  %s2 = inlined_call_operand.hbm [shape: f32[2,4,1,256], index: 2, kind: output, shape index: {}]
  %s3 = sld [smem:[#allocation0]]
  $region41: #{tpu_custom_call.1} parent=0
    _
  %s5 = ssub.s32 1, %s3
  %s6 = scalar_select 0, %s5, %s3
  %8 = dma.hbm_to_smem %s0, 16, [#allocation3], [#allocation2]
  %9 = dma.done [#allocation2], 16
  %10 = sfence
  $region1: #{tpu_custom_call.1} parent=0
    #allocation4 [shape = 'u8[4096]{0}', space=vmem, size = 0x1000, scoped, tag = 'input window, operand 1']
    #allocation5 [shape = 's32[2]{0}', space=sflag, size = 0x8, scoped, tag = 'scoped memory for tpu_custom_call.1']
    #allocation6 [shape = 's32[2]{0}', space=sflag, size = 0x8, scoped, tag = 'scoped memory for tpu_custom_call.1']
    #allocation7 [shape = 'u8[4096]{0}', space=vmem, size = 0x1000, scoped, tag = 'output window, operand 0']
    %11 = vsyncpa [#allocation5], 0
    %s12 = scalar_lea.sflag [#allocation5], 1
    %13 = vsyncpa %s12, 0
    %14 = vsyncpa [#allocation6], 0
    %s15 = scalar_lea.sflag [#allocation6], 1
    %16 = vsyncpa %s15, 0
    loop: start=0, step=1, limit=6
    $region2: #{tpu_custom_call.1} parent=1 // loop_pre_header
      _
    $region3: #{tpu_custom_call.1} parent=1 // loop_header
      %s18 = sphi 0, %s22
      %p19 = scmp.ge.s32.totalorder %s18, 6
      %s25 = sphi 0, %s37
      %s26 = sphi 0, %s33
      %s27 = sphi 0, %s25
      %s28 = sphi 0, %s26
      %s29 = sphi 0, %s27
      %s30 = sphi 0, %s28
      %s44 = sphi 0, %s46
      %s47 = sphi 0, %s44
      %s48 = sphi 0, %s47
      %s64 = sphi 0, %s48
      %s72 = sphi 0, %s74
      %s75 = sphi 0, %s72
      %s76 = sphi 0, %s75
      %s92 = sphi 0, %s76
    $region4: #{tpu_custom_call.1} parent=1 // loop_header_branch
      %21 = sbr.rel (%p19) target = $region8
    $region5: #{tpu_custom_call.1} parent=1 // loop_body
      %s23 = ssub.s32 %s18, 1
      %s24 = ssub.s32 %s18, 2
      %s31 = sadd.s32 1, %s26
      %p32 = scmp.ge.s32.totalorder %s31, 1
      %s33 = scalar_select %p32, 0, %s31
      %s34 = sadd.s32 1, %s25
      %s35 = scalar_select %p32, %s34, %s25
      %p36 = scmp.ge.s32.totalorder %s35, 4
      %s37 = scalar_select %p36, 0, %s35
      %s38 = sld [smem:[#allocation3 + %s25]]
      %s39 = sld [smem:[#allocation3 + %s37]]
      %s40 = ssub.s32 %s38, %s39
      %s41 = ssub.s32 %s26, %s33
      %s42 = sor.u32 %s40, %s41
      %p43 = scmp.eq.s32.totalorder %s42, 0
      %s45 = sadd.s32 %s44, 1
      %s46 = scalar_select %p43, %s44, %s45
      %p49 = pneg %p43
      %p50 = scmp.eq.s32.totalorder %s18, 3
      %p51 = por %p49, %p50
      %p52 = scmp.ne.s32.totalorder %s44, %s47
      %p53 = scmp.eq.s32.totalorder %s18, 0
      %p54 = por %p52, %p53
      %p55 = scmp.ne.s32.totalorder %s44, %s47
      %p56 = scmp.eq.s32.totalorder %s23, 3
      %p57 = por %p55, %p56
      %p58 = scmp.ne.s32.totalorder %s47, %s48
      %p59 = scmp.eq.s32.totalorder %s23, 0
      %p60 = por %p58, %p59
      %p61 = scmp.ne.s32.totalorder %s47, %s48
      %p62 = scmp.eq.s32.totalorder %s24, 3
      %p63 = por %p61, %p62
      %p65 = scmp.ne.s32.totalorder %s48, %s64
      %p66 = scmp.eq.s32.totalorder %s24, 0
      %p67 = por %p65, %p66
      %s68 = ssub.s32 %s25, %s37
      %s69 = ssub.s32 %s26, %s33
      %s70 = sor.u32 %s68, %s69
      %p71 = scmp.eq.s32.totalorder %s70, 0
      %s73 = sadd.s32 %s72, 1
      %s74 = scalar_select %p71, %s72, %s73
      %p77 = pneg %p71
      %p78 = scmp.eq.s32.totalorder %s18, 3
      %p79 = por %p77, %p78
      %p80 = scmp.ne.s32.totalorder %s72, %s75
      %p81 = scmp.eq.s32.totalorder %s18, 0
      %p82 = por %p80, %p81
      %p83 = scmp.ne.s32.totalorder %s72, %s75
      %p84 = scmp.eq.s32.totalorder %s23, 3
      %p85 = por %p83, %p84
      %p86 = scmp.ne.s32.totalorder %s75, %s76
      %p87 = scmp.eq.s32.totalorder %s23, 0
      %p88 = por %p86, %p87
      %p89 = scmp.ne.s32.totalorder %s75, %s76
      %p90 = scmp.eq.s32.totalorder %s24, 3
      %p91 = por %p89, %p90
      %p93 = scmp.ne.s32.totalorder %s76, %s92
      %p94 = scmp.eq.s32.totalorder %s24, 0
      %p95 = por %p93, %p94
      %p96 = scmp.le.s32.totalorder 1, %s18
      %p97 = scmp.lt.s32.totalorder %s18, 5
      %p98 = pnand %p96, %p97
      %p99 = pneg %p98
      // Predicated region
      $region9: #{tpu_custom_call.1} parent=5 // pred_check
        _
      $region10: #{tpu_custom_call.1} parent=5 // pred_check_branch
        %101 = sbr.rel (%p98) target = $region12
      $region11: #{tpu_custom_call.1} parent=5 // pred_region
        %s102 = ssub.s32 %s18, 1
      $region12: #{tpu_custom_call.1} parent=5 // pred_fallthru
        _
      %p103 = scmp.lt.s32.totalorder %s18, 4
      // Predicated region
      $region13: #{tpu_custom_call.1} parent=5 // pred_check
        %p104 = pneg %p103
      $region14: #{tpu_custom_call.1} parent=5 // pred_check_branch
        %106 = sbr.rel (%p104) target = $region16
      $region15: #{tpu_custom_call.1} parent=5 // pred_region
        // Predicated region
        $region17: #{tpu_custom_call.1} parent=15 // pred_check
          %p107 = pneg %p54
        $region18: #{tpu_custom_call.1} parent=15 // pred_check_branch
          %109 = sbr.rel (%p107) target = $region20
        $region19: #{tpu_custom_call.1} parent=15 // pred_region
          %s110 = sand.u32 %s44, 1
          %s111 = scalar_lea.sflag [#allocation5], %s110
          %s112 = sand.u32 %s44, 1
          %s113 = smul.addr %s112, 4
          %s114 = scalar_lea.vmem [#allocation4], %s113
          %s115 = sld [smem:[#allocation3 + %s25]]
          %s116 = smul.u32 2, %s26
          %s118 = ssub.s32 64, 64
          %119 = vsyncadd %s111, %s118
          %s120 = smul.addr %s115, 2
          %s121 = sadd.s32 %s116, %s120
          %s122 = smul.addr %s121, 16
          %s123 = scalar_lea.hbm %s1, %s122
          %s124 = sshll.u32 %s114, 4
          %s125 = int_to_ptr.vmem [resolvable:$true] %s124
          %130 = dma.hbm_to_vmem [thread:$0]  %s123, 64, %s125, %s111, 128, 32, 2
        $region20: #{tpu_custom_call.1} parent=15 // pred_fallthru
          _
      $region16: #{tpu_custom_call.1} parent=5 // pred_fallthru
        _
      %p131 = scmp.le.s32.totalorder 1, %s18
      %p132 = scmp.lt.s32.totalorder %s18, 5
      %p133 = pnand %p131, %p132
      %p134 = pneg %p133
      // Predicated region
      $region21: #{tpu_custom_call.1} parent=5 // pred_check
        _
      $region22: #{tpu_custom_call.1} parent=5 // pred_check_branch
        %136 = sbr.rel (%p133) target = $region24
      $region23: #{tpu_custom_call.1} parent=5 // pred_region
        %s137 = ssub.s32 %s18, 1
        %s138 = sand.u32 %s47, 1
        %s139 = scalar_lea.sflag [#allocation5], %s138
        %s140 = sand.u32 %s47, 1
        %s141 = smul.addr %s140, 4
        %s142 = scalar_lea.vmem [#allocation4], %s141
        // Predicated region
        $region25: #{tpu_custom_call.1} parent=23 // pred_check
          %p143 = pneg %p60
        $region26: #{tpu_custom_call.1} parent=23 // pred_check_branch
          %145 = sbr.rel (%p143) target = $region28
        $region27: #{tpu_custom_call.1} parent=23 // pred_region
          %146 = dma.done %s139, 64
        $region28: #{tpu_custom_call.1} parent=23 // pred_fallthru
          _
        %s147 = sand.u32 %s47, 1
        %s148 = scalar_lea.sflag [#allocation5], %s147
        %s149 = sand.u32 %s47, 1
        %s150 = smul.addr %s149, 4
        %s151 = scalar_lea.vmem [#allocation4], %s150
        %p152 = pneg %p60
        %p153 = pneg %p57
        %p154 = pneg %p88
        %p155 = pneg %p85
        %s156 = sand.u32 %s75, 1
        %s157 = scalar_lea.sflag [#allocation6], %s156
        %s158 = sand.u32 %s75, 1
        %s159 = smul.addr %s158, 4
        %s160 = scalar_lea.vmem [#allocation7], %s159
        %s161 = sld [smem:[#allocation3 + %s27]]
        %s162 = smul.u32 2, %s28
        %s163 = smul.u32 2, %s28
        %v164 = vld [vmem:[%s142] sm:$0x3]
        %v165 = vld [vmem:[%s142 + $0x2] sm:$0x3]
        %v166 = vlaneseq
        %vm167 = vcmp.ge.s32.totalorder %v166, 0
        %vm168 = vcmp.lt.s32.totalorder %v166, 256
        %vm169 = vmand %vm167, %vm168
        %170 = vst.msk [vmem:[%s160] sm:$0x3] %vm169, %v164
        %171 = vst.msk [vmem:[%s160 + $0x2] sm:$0x3] %vm169, %v165
        %s172 = sand.u32 %s75, 1
        %s173 = scalar_lea.sflag [#allocation6], %s172
        %s174 = sand.u32 %s75, 1
        %s175 = smul.addr %s174, 4
        %s176 = scalar_lea.vmem [#allocation7], %s175
        // Predicated region
        $region29: #{tpu_custom_call.1} parent=23 // pred_check
          %p177 = pneg %p85
        $region30: #{tpu_custom_call.1} parent=23 // pred_check_branch
          %179 = sbr.rel (%p177) target = $region32
        $region31: #{tpu_custom_call.1} parent=23 // pred_region
          %s180 = smul.u32 2, %s28
          %s182 = ssub.s32 64, 64
          %183 = vsyncadd %s173, %s182
          %s184 = smul.addr %s27, 2
          %s185 = sadd.s32 %s180, %s184
          %s186 = smul.addr %s185, 16
          %s187 = scalar_lea.hbm %s2, %s186
          %s188 = sshll.u32 %s176, 4
          %s189 = int_to_ptr.vmem [resolvable:$true] %s188
          %194 = dma.vmem_to_hbm [thread:$0]  %s189, 64, %s187, %s173, 32, 128, 2
        $region32: #{tpu_custom_call.1} parent=23 // pred_fallthru
          _
      $region24: #{tpu_custom_call.1} parent=5 // pred_fallthru
        _
      %p195 = scmp.le.s32.totalorder 2, %s18
      // Predicated region
      $region33: #{tpu_custom_call.1} parent=5 // pred_check
        %p196 = pneg %p195
      $region34: #{tpu_custom_call.1} parent=5 // pred_check_branch
        %198 = sbr.rel (%p196) target = $region36
      $region35: #{tpu_custom_call.1} parent=5 // pred_region
        %s199 = ssub.s32 %s18, 2
        // Predicated region
        $region37: #{tpu_custom_call.1} parent=35 // pred_check
          %p200 = pneg %p91
        $region38: #{tpu_custom_call.1} parent=35 // pred_check_branch
          %202 = sbr.rel (%p200) target = $region40
        $region39: #{tpu_custom_call.1} parent=35 // pred_region
          %s203 = sand.u32 %s76, 1
          %s204 = scalar_lea.sflag [#allocation6], %s203
          %s205 = sand.u32 %s76, 1
          %s206 = smul.addr %s205, 4
          %s207 = scalar_lea.vmem [#allocation7], %s206
          %208 = dma.done %s204, 64
        $region40: #{tpu_custom_call.1} parent=35 // pred_fallthru
          _
      $region36: #{tpu_custom_call.1} parent=5 // pred_fallthru
        _
    $region6: #{tpu_custom_call.1} parent=1 // loop_footer
      %s22 = sadd.s32 1, %s18
    $region7: #{tpu_custom_call.1} parent=1 // loop_footer_branch
      %17 = sbr.rel target = $region3
    $region8: #{tpu_custom_call.1} parent=1 // loop_exit
      _
    %209 = vsyncpa [#allocation5], 1
    %s210 = scalar_lea.sflag [#allocation5], 1
    %211 = vsyncpa %s210, 1
    %212 = vsyncpa [#allocation6], 1
    %s213 = scalar_lea.sflag [#allocation6], 1
    %214 = vsyncpa %s213, 1

</llo_original>
